<compile_context>
chip_gen: v7x
topology: tpu7x:2x2x1
jax: 0.10.0
libtpu: 0.0.40
codegen_flags: <defaults>
</compile_context>

<pallas_src>
import functools

import jax
import jax.numpy as jnp
from jax.experimental import pallas as pl
from jax.experimental.pallas import tpu as pltpu


def _label_smoothing_kernel(x_ref, t_ref, out_ref, *, confidence, eps, pad_index,
                            n_rows, tm, v_chunk):
    V = x_ref.shape[1]
    t = t_ref[...]                                            # (tm, 1) int32

    # Global-row validity (handles the ragged last block without padding the logits).
    row = (pl.program_id(0) * tm
           + jax.lax.broadcasted_iota(jnp.int32, (tm, 1), 0))
    not_pad = (t != pad_index) & (row < n_rows)

    if v_chunk is None:
        # Whole-tile path (small or irregular vocab). Casts live inside each
        # reduction, so no standalone (tm, V) f32 copy is materialized.
        m = jnp.max(x_ref[...], axis=1, keepdims=True).astype(jnp.float32)   # (tm,1)
        sum_exp = jnp.sum(jnp.exp(x_ref[...].astype(jnp.float32) - m),
                          axis=1, keepdims=True)                             # (tm,1)
        lane = jax.lax.broadcasted_iota(jnp.int32, (1, V), 1)
        w = jnp.where(lane == t, confidence, eps)             # broadcast -> (tm,V) f32
        ws = jnp.sum(w * x_ref[...].astype(jnp.float32), axis=1, keepdims=True)
    else:
        # Streamed two-pass path: pass 1 = row max, pass 2 = fused sum_exp +
        # weighted sum, chunked over V so each element is loaded exactly twice.
        n_chunks = V // v_chunk
        lane = jax.lax.broadcasted_iota(jnp.int32, (1, v_chunk), 1)

        def _max_body(ci, m):
            start = pl.multiple_of(ci * v_chunk, v_chunk)
            xc = x_ref[:, pl.ds(start, v_chunk)]
            return jnp.maximum(
                m, jnp.max(xc, axis=1, keepdims=True).astype(jnp.float32))

        m = jax.lax.fori_loop(0, n_chunks, _max_body,
                              jnp.full((tm, 1), -jnp.inf, dtype=jnp.float32),
                              unroll=True)

        def _acc_body(ci, carry):
            se, ws = carry
            start = pl.multiple_of(ci * v_chunk, v_chunk)
            xc = x_ref[:, pl.ds(start, v_chunk)].astype(jnp.float32)
            se = se + jnp.sum(jnp.exp(xc - m), axis=1, keepdims=True)
            w = jnp.where(lane + ci * v_chunk == t, confidence, eps)
            ws = ws + jnp.sum(w * xc, axis=1, keepdims=True)
            return se, ws

        zero = jnp.zeros((tm, 1), dtype=jnp.float32)
        sum_exp, ws = jax.lax.fori_loop(0, n_chunks, _acc_body, (zero, zero),
                                        unroll=True)

    lse = m + jnp.log(sum_exp)
    # Smoothed one-hot weights sum to 1  =>  loss_r = lse_r - sum_j w_j x_rj.
    row_loss = jnp.where(not_pad, lse - ws, 0.0)              # where, not *, so garbage
    s = jnp.sum(row_loss)                                     # rows can't inject NaN/Inf
    c = jnp.sum(jnp.where(not_pad, 1.0, 0.0))

    # Lane/sublane-aligned partials: sum -> [0,0,0], count -> [0,0,1].
    sub_o = jax.lax.broadcasted_iota(jnp.int32, out_ref.shape, 1)
    lane_o = jax.lax.broadcasted_iota(jnp.int32, out_ref.shape, 2)
    out_ref[...] = (jnp.where((sub_o == 0) & (lane_o == 0), s, 0.0)
                    + jnp.where((sub_o == 0) & (lane_o == 1), c, 0.0))


def _vmem_budget():
    """(per-tile byte budget, vmem_limit_bytes), sized per TPU generation."""
    try:
        cap = pltpu.get_tpu_info().vmem_capacity_bytes
    except Exception:
        cap = 64 * 1024 * 1024                      # conservative (v7x-sized) default
    if cap >= 96 * 1024 * 1024:                     # v5e / v6e: 128 MiB VMEM
        return 12 * 1024 * 1024, 64 * 1024 * 1024
    return 4 * 1024 * 1024, 32 * 1024 * 1024        # v7x: 64 MiB VMEM per TC


def _pick_tm(n_rows, vocab, itemsize, tile_budget_bytes):
    """Row tile: biggest tile whose single x buffer stays under the budget."""
    quantum = 16 if itemsize == 2 else 8            # sublane packing quantum
    rows = max(quantum, tile_budget_bytes // max(1, vocab * itemsize))
    rows = min(rows, 1024)
    rows = max(quantum, (rows // quantum) * quantum)
    # Keep >= ~4 grid steps when the row count allows so the "parallel" grid
    # axis can actually be sharded across both TensorCores on v7x.
    per_block = -(-n_rows // 4)
    per_block = max(quantum, ((per_block + quantum - 1) // quantum) * quantum)
    rows = min(rows, per_block)
    # Never tile past the (quantum-rounded) number of rows we actually have.
    n_round = ((n_rows + quantum - 1) // quantum) * quantum
    return min(rows, n_round)


def _pick_v_chunk(vocab):
    """Chunk width for the streamed two-pass reduction (None => whole tile)."""
    for c in (4096, 2048, 1024, 512):
        if vocab % c == 0 and 2 <= vocab // c <= 16:
            return c
    return None


def label_smoothing_loss(x, target, *, size, smoothing=0.1, pad_index=0, tm=None):
    """x: (N, size) logits (f32 or bf16); target: (N,) int. Returns scalar loss."""
    N, V = x.shape
    assert V == size
    confidence = 1.0 - smoothing
    eps = smoothing / (size - 1)

    tile_budget, vmem_limit = _vmem_budget()
    if tm is None:
        tm = _pick_tm(N, V, x.dtype.itemsize, tile_budget)
    v_chunk = _pick_v_chunk(V)

    num_blocks = pl.cdiv(N, tm)
    t2d = target.astype(jnp.int32).reshape(N, 1)

    kernel = functools.partial(
        _label_smoothing_kernel,
        confidence=confidence, eps=eps, pad_index=pad_index,
        n_rows=N, tm=tm, v_chunk=v_chunk)

    cost = pl.CostEstimate(
        flops=int(5 * N * V),
        transcendentals=int(N * V + N),
        bytes_accessed=int(N * V * x.dtype.itemsize + N * 4
                           + num_blocks * 8 * 128 * 4),
    )

    partials = pl.pallas_call(
        kernel,
        out_shape=jax.ShapeDtypeStruct((num_blocks, 8, 128), jnp.float32),
        grid_spec=pltpu.PrefetchScalarGridSpec(
            num_scalar_prefetch=0,
            grid=(num_blocks,),
            in_specs=[
                pl.BlockSpec((tm, V), lambda i: (i, 0)),
                pl.BlockSpec((tm, 1), lambda i: (i, 0)),
            ],
            out_specs=pl.BlockSpec((1, 8, 128), lambda i: (i, 0, 0)),
        ),
        compiler_params=pltpu.CompilerParams(
            dimension_semantics=("parallel",),
            vmem_limit_bytes=vmem_limit,
        ),
        cost_estimate=cost,
    )(x, t2d)

    loss_sum = jnp.sum(partials[:, 0, 0])
    cnt = jnp.sum(partials[:, 0, 1])
    # Note: if every target == pad_index, cnt == 0 and this yields NaN/Inf,
    # matching the reference PyTorch module's behavior.
    return loss_sum / cnt


def _reference(x, target, size, smoothing=0.1, pad_index=0):
    confidence = 1.0 - smoothing
    one_hot = jax.nn.one_hot(target, size, dtype=jnp.float32)
    one_hot = one_hot * confidence + (1.0 - one_hot) * smoothing / (size - 1)
    log_prb = jax.nn.log_softmax(x.astype(jnp.float32), axis=1)
    mask = (target != pad_index)
    loss = -(one_hot * log_prb).sum(axis=1)
    return (loss * mask).sum() / mask.sum()


if __name__ == "__main__":
    key = jax.random.PRNGKey(0)
    k1, k2, k3, k4 = jax.random.split(key, 4)

    # Test 1: module-sized inputs (batch=2, dec_seq_len=8, vocab=32) -> whole-tile path.
    batch, seq, vocab = 2, 8, 32
    N = batch * seq
    x = jax.random.normal(k1, (N, vocab), dtype=jnp.float32)
    target = jax.random.randint(k2, (N,), 0, vocab, dtype=jnp.int32)  # 0 == pad_index

    loss = jax.block_until_ready(label_smoothing_loss(x, target, size=vocab, smoothing=0.1))
    ref = _reference(x, target, vocab, smoothing=0.1)
    assert jnp.allclose(loss, ref, atol=1e-5, rtol=1e-5), (loss, ref)

    # Test 2: ragged row count + streamed two-pass (chunked-V) reduction path.
    N2, vocab2 = 20, 1024
    x2 = jax.random.normal(k3, (N2, vocab2), dtype=jnp.float32)
    target2 = jax.random.randint(k4, (N2,), 0, vocab2, dtype=jnp.int32)

    loss2 = jax.block_until_ready(label_smoothing_loss(x2, target2, size=vocab2, smoothing=0.1))
    ref2 = _reference(x2, target2, vocab2, smoothing=0.1)
    assert jnp.allclose(loss2, ref2, atol=1e-5, rtol=1e-5), (loss2, ref2)

    print("KERNEL_OK")
</pallas_src>

<mosaic_0001>
module attributes {stable_mosaic.version = 11 : i64} {
  func.func @_label_smoothing_kernel(%arg0: i32, %arg1: memref<8x32xf32, #tpu.memory_space<vmem>>, %arg2: memref<8x1xi32, #tpu.memory_space<vmem>>, %arg3: memref<1x8x128xf32, #tpu.memory_space<vmem>>) attributes {dimension_semantics = [#tpu.dimension_semantics<parallel>], iteration_bounds = array<i64: 2>, scalar_prefetch = 0 : i64, scratch_operands = 0 : i64, tpu.core_type = #tpu.core_type<tc>, window_params = [{transform_indices = @transform_0, window_bounds = array<i64: 8, 32>}, {transform_indices = @transform_1, window_bounds = array<i64: 8, 1>}, {transform_indices = @transform_2, window_bounds = array<i64: 1, 8, 128>}]} {
    %c0 = arith.constant 0 : index
    %c0_0 = arith.constant 0 : index
    %0 = vector.load %arg2[%c0, %c0_0] : memref<8x1xi32, #tpu.memory_space<vmem>>, vector<8x1xi32>
    %c8_i32 = arith.constant 8 : i32
    %1 = arith.muli %arg0, %c8_i32 : i32
    %2 = tpu.iota {dimensions = array<i32: 0>} : vector<8x1xi32>
    %3 = vector.broadcast %1 : i32 to vector<8x1xi32>
    %4 = arith.addi %3, %2 : vector<8x1xi32>
    %c0_i32 = arith.constant 0 : i32
    %5 = vector.broadcast %c0_i32 : i32 to vector<8x1xi32>
    %6 = arith.cmpi ne, %0, %5 : vector<8x1xi32>
    %c16_i32 = arith.constant 16 : i32
    %7 = vector.broadcast %c16_i32 : i32 to vector<8x1xi32>
    %8 = arith.cmpi slt, %4, %7 : vector<8x1xi32>
    %9 = arith.andi %6, %8 : vector<8x1xi1>
    %c0_1 = arith.constant 0 : index
    %c0_2 = arith.constant 0 : index
    %10 = vector.load %arg1[%c0_1, %c0_2] : memref<8x32xf32, #tpu.memory_space<vmem>>, vector<8x32xf32>
    %cst = arith.constant dense<0xFF800000> : vector<8xf32>
    %11 = vector.multi_reduction <maximumf>, %10, %cst [1] : vector<8x32xf32> to vector<8xf32>
    %12 = vector.shape_cast %11 : vector<8xf32> to vector<8x1xf32>
    %c0_3 = arith.constant 0 : index
    %c0_4 = arith.constant 0 : index
    %13 = vector.load %arg1[%c0_3, %c0_4] : memref<8x32xf32, #tpu.memory_space<vmem>>, vector<8x32xf32>
    %14 = vector.broadcast %12 : vector<8x1xf32> to vector<8x32xf32>
    %15 = arith.subf %13, %14 : vector<8x32xf32>
    %16 = math.exp %15 : vector<8x32xf32>
    %cst_5 = arith.constant dense<0.000000e+00> : vector<8xf32>
    %17 = vector.multi_reduction <add>, %16, %cst_5 [1] : vector<8x32xf32> to vector<8xf32>
    %18 = vector.shape_cast %17 : vector<8xf32> to vector<8x1xf32>
    %19 = tpu.iota {dimensions = array<i32: 1>} : vector<1x32xi32>
    %20 = vector.broadcast %19 : vector<1x32xi32> to vector<8x32xi32>
    %21 = vector.broadcast %0 : vector<8x1xi32> to vector<8x32xi32>
    %22 = arith.cmpi eq, %20, %21 : vector<8x32xi32>
    %cst_6 = arith.constant 0.899999976 : f32
    %cst_7 = arith.constant 0.0032258064 : f32
    %23 = vector.broadcast %cst_6 : f32 to vector<8x32xf32>
    %24 = vector.broadcast %cst_7 : f32 to vector<8x32xf32>
    %25 = arith.select %22, %23, %24 : vector<8x32xi1>, vector<8x32xf32>
    %c0_8 = arith.constant 0 : index
    %c0_9 = arith.constant 0 : index
    %26 = vector.load %arg1[%c0_8, %c0_9] : memref<8x32xf32, #tpu.memory_space<vmem>>, vector<8x32xf32>
    %27 = arith.mulf %25, %26 : vector<8x32xf32>
    %cst_10 = arith.constant dense<0.000000e+00> : vector<8xf32>
    %28 = vector.multi_reduction <add>, %27, %cst_10 [1] : vector<8x32xf32> to vector<8xf32>
    %29 = vector.shape_cast %28 : vector<8xf32> to vector<8x1xf32>
    %30 = math.log %18 : vector<8x1xf32>
    %31 = arith.addf %12, %30 : vector<8x1xf32>
    %32 = arith.subf %31, %29 : vector<8x1xf32>
    %cst_11 = arith.constant 0.000000e+00 : f32
    %33 = vector.broadcast %cst_11 : f32 to vector<8x1xf32>
    %34 = arith.select %9, %32, %33 : vector<8x1xi1>, vector<8x1xf32>
    %35 = vector.shape_cast %34 : vector<8x1xf32> to vector<1x8x1xf32>
    %cst_12 = arith.constant dense<0.000000e+00> : vector<1xf32>
    %36 = vector.multi_reduction <add>, %35, %cst_12 [1, 2] : vector<1x8x1xf32> to vector<1xf32>
    %37 = vector.shape_cast %36 : vector<1xf32> to vector<1x1x1xf32>
    %38 = vector.extract %37[0, 0, 0] : f32 from vector<1x1x1xf32>
    %cst_13 = arith.constant 1.000000e+00 : f32
    %cst_14 = arith.constant 0.000000e+00 : f32
    %39 = vector.broadcast %cst_13 : f32 to vector<8x1xf32>
    %40 = vector.broadcast %cst_14 : f32 to vector<8x1xf32>
    %41 = arith.select %9, %39, %40 : vector<8x1xi1>, vector<8x1xf32>
    %42 = vector.shape_cast %41 : vector<8x1xf32> to vector<1x8x1xf32>
    %cst_15 = arith.constant dense<0.000000e+00> : vector<1xf32>
    %43 = vector.multi_reduction <add>, %42, %cst_15 [1, 2] : vector<1x8x1xf32> to vector<1xf32>
    %44 = vector.shape_cast %43 : vector<1xf32> to vector<1x1x1xf32>
    %45 = vector.extract %44[0, 0, 0] : f32 from vector<1x1x1xf32>
    %46 = tpu.iota {dimensions = array<i32: 1>} : vector<1x8x128xi32>
    %47 = tpu.iota {dimensions = array<i32: 2>} : vector<1x8x128xi32>
    %c0_i32_16 = arith.constant 0 : i32
    %48 = vector.broadcast %c0_i32_16 : i32 to vector<1x8x128xi32>
    %49 = arith.cmpi eq, %46, %48 : vector<1x8x128xi32>
    %c0_i32_17 = arith.constant 0 : i32
    %50 = vector.broadcast %c0_i32_17 : i32 to vector<1x8x128xi32>
    %51 = arith.cmpi eq, %47, %50 : vector<1x8x128xi32>
    %52 = arith.andi %49, %51 : vector<1x8x128xi1>
    %cst_18 = arith.constant 0.000000e+00 : f32
    %53 = vector.broadcast %38 : f32 to vector<1x8x128xf32>
    %54 = vector.broadcast %cst_18 : f32 to vector<1x8x128xf32>
    %55 = arith.select %52, %53, %54 : vector<1x8x128xi1>, vector<1x8x128xf32>
    %c0_i32_19 = arith.constant 0 : i32
    %56 = vector.broadcast %c0_i32_19 : i32 to vector<1x8x128xi32>
    %57 = arith.cmpi eq, %46, %56 : vector<1x8x128xi32>
    %c1_i32 = arith.constant 1 : i32
    %58 = vector.broadcast %c1_i32 : i32 to vector<1x8x128xi32>
    %59 = arith.cmpi eq, %47, %58 : vector<1x8x128xi32>
    %60 = arith.andi %57, %59 : vector<1x8x128xi1>
    %cst_20 = arith.constant 0.000000e+00 : f32
    %61 = vector.broadcast %45 : f32 to vector<1x8x128xf32>
    %62 = vector.broadcast %cst_20 : f32 to vector<1x8x128xf32>
    %63 = arith.select %60, %61, %62 : vector<1x8x128xi1>, vector<1x8x128xf32>
    %64 = arith.addf %55, %63 : vector<1x8x128xf32>
    %c0_21 = arith.constant 0 : index
    %c0_22 = arith.constant 0 : index
    %c0_23 = arith.constant 0 : index
    %65 = vector.load %arg3[%c0_21, %c0_22, %c0_23] : memref<1x8x128xf32, #tpu.memory_space<vmem>>, vector<1x8x128xf32>
    tpu.vector_store %arg3[%c0_21, %c0_22, %c0_23], %64 {strides = array<i32>} : memref<1x8x128xf32, #tpu.memory_space<vmem>>, vector<1x8x128xf32>,
    return
  }
  func.func @transform_0(%arg0: i32) -> (i32, i32) {
    %c0_i32 = arith.constant 0 : i32
    %c0_i32_0 = arith.constant 0 : i32
    return %arg0, %c0_i32 : i32, i32
  }
  func.func @transform_1(%arg0: i32) -> (i32, i32) {
    %c0_i32 = arith.constant 0 : i32
    %c0_i32_0 = arith.constant 0 : i32
    return %arg0, %c0_i32 : i32, i32
  }
  func.func @transform_2(%arg0: i32) -> (i32, i32, i32) {
    %c0_i32 = arith.constant 0 : i32
    %c0_i32_0 = arith.constant 0 : i32
    %c0_i32_1 = arith.constant 0 : i32
    return %arg0, %c0_i32, %c0_i32_0 : i32, i32, i32
  }
}

</mosaic_0001>

<llo_original>
// kernel: tpu_custom_call.1
$region0: #{tpu_custom_call.1}
  #allocation0 [shape = 'u32[]', space=smem, size = 0x4, offset = 0x4, fixed_abs, tag = 'smem constant byte address 0x4 - core index']
  #allocation1 [shape = 'u32[144,128]{1,0:T(1,128)}', space=vmem, size = 0x12000, scoped, tag = 'internal scratch']
  %s0 = inlined_call_operand.vmem [shape: f32[16,32], index: 0, kind: input, shape index: {}]
  %s1 = inlined_call_operand.vmem [shape: s32[16,1], index: 1, kind: input, shape index: {}]
  %s2 = inlined_call_operand.hbm [shape: f32[2,8,128], index: 2, kind: output, shape index: {}]
  %s3 = sld [smem:[#allocation0]]
  $region41: #{tpu_custom_call.1} parent=0
    _
  %s5 = ssub.s32 1, %s3
  %s6 = scalar_select 0, %s5, %s3
  $region1: #{tpu_custom_call.1} parent=0
    #allocation2 [shape = 'u8[8192]{0}', space=vmem, size = 0x2000, scoped, tag = 'output window, operand 0']
    #allocation3 [shape = 's32[2]{0}', space=sflag, size = 0x8, scoped, tag = 'scoped memory for tpu_custom_call.1']
    %7 = vsyncpa [#allocation3], 0
    %s8 = scalar_lea.sflag [#allocation3], 1
    %9 = vsyncpa %s8, 0
    loop: start=0, step=1, limit=4
    $region2: #{tpu_custom_call.1} parent=1 // loop_pre_header
      _
    $region3: #{tpu_custom_call.1} parent=1 // loop_header
      %s11 = sphi 0, %s15
      %p12 = scmp.ge.s32.totalorder %s11, 4
      %s21 = sphi 0, %s23
      %s24 = sphi 0, %s21
      %s25 = sphi 0, %s24
      %s41 = sphi 0, %s25
      %s47 = sphi 0, %s49
      %s50 = sphi 0, %s47
      %s51 = sphi 0, %s50
      %s67 = sphi 0, %s51
      %s73 = sphi 0, %s75
      %s76 = sphi 0, %s73
      %s77 = sphi 0, %s76
      %s93 = sphi 0, %s77
    $region4: #{tpu_custom_call.1} parent=1 // loop_header_branch
      %14 = sbr.rel (%p12) target = $region8
    $region5: #{tpu_custom_call.1} parent=1 // loop_body
      %s16 = ssub.s32 %s11, 1
      %s17 = ssub.s32 %s11, 2
      %s18 = sadd.s32 %s11, 1
      %s19 = ssub.s32 %s11, %s18
      %p20 = scmp.eq.s32.totalorder %s19, 0
      %s22 = sadd.s32 %s21, 1
      %s23 = scalar_select %p20, %s21, %s22
      %p26 = pneg %p20
      %p27 = scmp.eq.s32.totalorder %s11, 1
      %p28 = por %p26, %p27
      %p29 = scmp.ne.s32.totalorder %s21, %s24
      %p30 = scmp.eq.s32.totalorder %s11, 0
      %p31 = por %p29, %p30
      %p32 = scmp.ne.s32.totalorder %s21, %s24
      %p33 = scmp.eq.s32.totalorder %s16, 1
      %p34 = por %p32, %p33
      %p35 = scmp.ne.s32.totalorder %s24, %s25
      %p36 = scmp.eq.s32.totalorder %s16, 0
      %p37 = por %p35, %p36
      %p38 = scmp.ne.s32.totalorder %s24, %s25
      %p39 = scmp.eq.s32.totalorder %s17, 1
      %p40 = por %p38, %p39
      %p42 = scmp.ne.s32.totalorder %s25, %s41
      %p43 = scmp.eq.s32.totalorder %s17, 0
      %p44 = por %p42, %p43
      %s45 = ssub.s32 %s11, %s18
      %p46 = scmp.eq.s32.totalorder %s45, 0
      %s48 = sadd.s32 %s47, 1
      %s49 = scalar_select %p46, %s47, %s48
      %p52 = pneg %p46
      %p53 = scmp.eq.s32.totalorder %s11, 1
      %p54 = por %p52, %p53
      %p55 = scmp.ne.s32.totalorder %s47, %s50
      %p56 = scmp.eq.s32.totalorder %s11, 0
      %p57 = por %p55, %p56
      %p58 = scmp.ne.s32.totalorder %s47, %s50
      %p59 = scmp.eq.s32.totalorder %s16, 1
      %p60 = por %p58, %p59
      %p61 = scmp.ne.s32.totalorder %s50, %s51
      %p62 = scmp.eq.s32.totalorder %s16, 0
      %p63 = por %p61, %p62
      %p64 = scmp.ne.s32.totalorder %s50, %s51
      %p65 = scmp.eq.s32.totalorder %s17, 1
      %p66 = por %p64, %p65
      %p68 = scmp.ne.s32.totalorder %s51, %s67
      %p69 = scmp.eq.s32.totalorder %s17, 0
      %p70 = por %p68, %p69
      %s71 = ssub.s32 %s11, %s18
      %p72 = scmp.eq.s32.totalorder %s71, 0
      %s74 = sadd.s32 %s73, 1
      %s75 = scalar_select %p72, %s73, %s74
      %p78 = pneg %p72
      %p79 = scmp.eq.s32.totalorder %s11, 1
      %p80 = por %p78, %p79
      %p81 = scmp.ne.s32.totalorder %s73, %s76
      %p82 = scmp.eq.s32.totalorder %s11, 0
      %p83 = por %p81, %p82
      %p84 = scmp.ne.s32.totalorder %s73, %s76
      %p85 = scmp.eq.s32.totalorder %s16, 1
      %p86 = por %p84, %p85
      %p87 = scmp.ne.s32.totalorder %s76, %s77
      %p88 = scmp.eq.s32.totalorder %s16, 0
      %p89 = por %p87, %p88
      %p90 = scmp.ne.s32.totalorder %s76, %s77
      %p91 = scmp.eq.s32.totalorder %s17, 1
      %p92 = por %p90, %p91
      %p94 = scmp.ne.s32.totalorder %s77, %s93
      %p95 = scmp.eq.s32.totalorder %s17, 0
      %p96 = por %p94, %p95
      %p97 = scmp.le.s32.totalorder 1, %s11
      %p98 = scmp.lt.s32.totalorder %s11, 3
      %p99 = pnand %p97, %p98
      %p100 = pneg %p99
      // Predicated region
      $region9: #{tpu_custom_call.1} parent=5 // pred_check
        _
      $region10: #{tpu_custom_call.1} parent=5 // pred_check_branch
        %102 = sbr.rel (%p99) target = $region12
      $region11: #{tpu_custom_call.1} parent=5 // pred_region
        %s103 = ssub.s32 %s11, 1
      $region12: #{tpu_custom_call.1} parent=5 // pred_fallthru
        _
      %p104 = scmp.lt.s32.totalorder %s11, 2
      // Predicated region
      $region13: #{tpu_custom_call.1} parent=5 // pred_check
        %p105 = pneg %p104
      $region14: #{tpu_custom_call.1} parent=5 // pred_check_branch
        %107 = sbr.rel (%p105) target = $region16
      $region15: #{tpu_custom_call.1} parent=5 // pred_region
        // Predicated region
        $region17: #{tpu_custom_call.1} parent=15 // pred_check
          %p108 = pneg %p31
        $region18: #{tpu_custom_call.1} parent=15 // pred_check_branch
          %110 = sbr.rel (%p108) target = $region20
        $region19: #{tpu_custom_call.1} parent=15 // pred_region
          %p111 = scmp.lt.s32.totalorder %s11, 1
          %s112 = scalar_select %p111, %s11, 1
          %s113 = smul.addr %s112, 8
          %s114 = scalar_lea.vmem %s0, %s113
        $region20: #{tpu_custom_call.1} parent=15 // pred_fallthru
          _
        // Predicated region
        $region21: #{tpu_custom_call.1} parent=15 // pred_check
          %p115 = pneg %p57
        $region22: #{tpu_custom_call.1} parent=15 // pred_check_branch
          %117 = sbr.rel (%p115) target = $region24
        $region23: #{tpu_custom_call.1} parent=15 // pred_region
          %p118 = scmp.lt.s32.totalorder %s11, 1
          %s119 = scalar_select %p118, %s11, 1
          %s120 = smul.addr %s119, 8
          %s121 = scalar_lea.vmem %s1, %s120
        $region24: #{tpu_custom_call.1} parent=15 // pred_fallthru
          _
      $region16: #{tpu_custom_call.1} parent=5 // pred_fallthru
        _
      %p122 = scmp.le.s32.totalorder 1, %s11
      %p123 = scmp.lt.s32.totalorder %s11, 3
      %p124 = pnand %p122, %p123
      %p125 = pneg %p124
      // Predicated region
      $region25: #{tpu_custom_call.1} parent=5 // pred_check
        _
      $region26: #{tpu_custom_call.1} parent=5 // pred_check_branch
        %127 = sbr.rel (%p124) target = $region28
      $region27: #{tpu_custom_call.1} parent=5 // pred_region
        %s128 = ssub.s32 %s11, 1
        %p129 = scmp.lt.s32.totalorder %s16, 1
        %s130 = scalar_select %p129, %s16, 1
        %s131 = smul.addr %s130, 8
        %s132 = scalar_lea.vmem %s0, %s131
        %p133 = pneg %p37
        %p134 = pneg %p34
        %p135 = scmp.lt.s32.totalorder %s16, 1
        %s136 = scalar_select %p135, %s16, 1
        %s137 = smul.addr %s136, 8
        %s138 = scalar_lea.vmem %s1, %s137
        %p139 = pneg %p63
        %p140 = pneg %p60
        %p141 = pneg %p89
        %p142 = pneg %p86
        %s143 = sand.u32 %s76, 1
        %s144 = scalar_lea.sflag [#allocation3], %s143
        %s145 = sand.u32 %s76, 1
        %s146 = smul.addr %s145, 8
        %s147 = scalar_lea.vmem [#allocation2], %s146
        %p148 = scmp.lt.s32.totalorder %s16, 1
        %s149 = scalar_select %p148, %s16, 1
        %s150 = smul.addr %s149, 8
        %s151 = scalar_lea.vmem %s0, %s150
        %p152 = scmp.lt.s32.totalorder %s16, 1
        %s153 = scalar_select %p152, %s16, 1
        %s154 = smul.addr %s153, 8
        %s155 = scalar_lea.vmem %s1, %s154
        %v156 = vld [vmem:[%s155] sm:$0xff]
        %s157 = smul.u32 %s16, 8
        %v158 = vlaneseq
        %v159 = vshrl.u32 %v158, 7
        %v160 = vstv %s157
        %v161 = vadd.s32 %v160, %v159
        %vm162 = vcmp.ne.s32.totalorder %v156, 0
        %vm163 = vcmp.lt.s32.totalorder %v161, 16
        %vm164 = vmand %vm162, %vm163
        %v165 = vld [vmem:[%s151] sm:$0xff]
        %vm166 = vcmask 261120
        %v167 = vsel %vm166, %v165, -inf
        %168 = vmax.xlane.f32.xlu0 %v167
        %v169 = vpop.xlane.xlu0 %168
        %v170 = vsub.f32 %v165, %v169
        %v171 = vmul.f32 %v170, 1.442695
        %v172 = vpow.pop %v171
        %v173 = vsel %vm166, %v172, 0.0
        %174 = vadd.xlane.f32.xlu0 %v173
        %v175 = vpop.xlane.xlu0 %174
        %v176 = vlaneseq
        %v177 = vand.u32 %v176, 127
        %178 = vset.pattern.permute.xlu0 0
        %179 = vperm.xlu0 %178, %v156
        %v180 = vpop.permute.xlu0 %179
        %vm181 = vcmp.eq.s32.totalorder %v177, %v180
        %v182 = vsel %vm181, 0.9, 0.0032258064
        %v183 = vmul.f32 %v182, %v165
        %v184 = vsel %vm166, %v183, 0.0
        %185 = vadd.xlane.f32.xlu0 %v184
        %v186 = vpop.xlane.xlu0 %185
        %v187 = vlog2.pop %v175
        %v188 = vmul.f32 %v187, 0.6931472
        %v189 = vadd.f32 %v169, %v188
        %v190 = vsub.f32 %v189, %v186
        %v191 = vsel %vm164, %v190, 0.0
        %vm192 = vcmask 7168
        %v193 = vsel %vm192, %v191, 0.0
        %194 = vadd.xlane.f32.xlu0 %v193
        %v195 = vpop.xlane.xlu0 %194
        %v196 = vrot.slane %v195, 4
        %v197 = vadd.f32 %v195, %v196
        %v198 = vrot.slane %v197, 2
        %v199 = vadd.f32 %v197, %v198
        %v200 = vrot.slane %v199, 1
        %v201 = vadd.f32 %v199, %v200
        %s202 = vtos %v201
        %v203 = vsel %vm164, 1.0, 0.0
        %v204 = vsel %vm192, %v203, 0.0
        %205 = vadd.xlane.f32.xlu0 %v204
        %v206 = vpop.xlane.xlu0 %205
        %v207 = vrot.slane %v206, 4
        %v208 = vadd.f32 %v206, %v207
        %v209 = vrot.slane %v208, 2
        %v210 = vadd.f32 %v208, %v209
        %v211 = vrot.slane %v210, 1
        %v212 = vadd.f32 %v210, %v211
        %s213 = vtos %v212
        %vm214 = vcmp.eq.s32.totalorder %v159, 0
        %vm215 = vcmp.eq.s32.totalorder %v177, 0
        %vm216 = vmand %vm214, %vm215
        %v217 = vstv %s202
        %v218 = vsel %vm216, %v217, 0.0
        %vm219 = vcmp.eq.s32.totalorder %v177, 1
        %vm220 = vmand %vm214, %vm219
        %v221 = vstv %s213
        %v222 = vsel %vm220, %v221, 0.0
        %v223 = vadd.f32 %v218, %v222
        %224 = vst [vmem:[%s147] sm:$0xff] %v223
        %s225 = sand.u32 %s76, 1
        %s226 = scalar_lea.sflag [#allocation3], %s225
        %s227 = sand.u32 %s76, 1
        %s228 = smul.addr %s227, 8
        %s229 = scalar_lea.vmem [#allocation2], %s228
        // Predicated region
        $region29: #{tpu_custom_call.1} parent=27 // pred_check
          %p230 = pneg %p86
        $region30: #{tpu_custom_call.1} parent=27 // pred_check_branch
          %232 = sbr.rel (%p230) target = $region32
        $region31: #{tpu_custom_call.1} parent=27 // pred_region
          %s234 = ssub.s32 128, 128
          %235 = vsyncadd %s226, %s234
          %s236 = smul.addr %s16, 128
          %s237 = scalar_lea.hbm %s2, %s236
          %s239 = sshll.u32 %s229, 4
          %s240 = int_to_ptr.vmem [resolvable:$true] %s239
          %242 = dma.vmem_to_hbm [thread:$0]  %s240, 128, %s237, %s226
        $region32: #{tpu_custom_call.1} parent=27 // pred_fallthru
          _
      $region28: #{tpu_custom_call.1} parent=5 // pred_fallthru
        _
      %p243 = scmp.le.s32.totalorder 2, %s11
      // Predicated region
      $region33: #{tpu_custom_call.1} parent=5 // pred_check
        %p244 = pneg %p243
      $region34: #{tpu_custom_call.1} parent=5 // pred_check_branch
        %246 = sbr.rel (%p244) target = $region36
      $region35: #{tpu_custom_call.1} parent=5 // pred_region
        %s247 = ssub.s32 %s11, 2
        // Predicated region
        $region37: #{tpu_custom_call.1} parent=35 // pred_check
          %p248 = pneg %p92
        $region38: #{tpu_custom_call.1} parent=35 // pred_check_branch
          %250 = sbr.rel (%p248) target = $region40
        $region39: #{tpu_custom_call.1} parent=35 // pred_region
          %s251 = sand.u32 %s77, 1
          %s252 = scalar_lea.sflag [#allocation3], %s251
          %s253 = sand.u32 %s77, 1
          %s254 = smul.addr %s253, 8
          %s255 = scalar_lea.vmem [#allocation2], %s254
          %256 = dma.done %s252, 128
        $region40: #{tpu_custom_call.1} parent=35 // pred_fallthru
          _
      $region36: #{tpu_custom_call.1} parent=5 // pred_fallthru
        _
    $region6: #{tpu_custom_call.1} parent=1 // loop_footer
      %s15 = sadd.s32 1, %s11
    $region7: #{tpu_custom_call.1} parent=1 // loop_footer_branch
      %10 = sbr.rel target = $region3
    $region8: #{tpu_custom_call.1} parent=1 // loop_exit
      _
    %257 = vsyncpa [#allocation3], 1
    %s258 = scalar_lea.sflag [#allocation3], 1
    %259 = vsyncpa %s258, 1

</llo_original>
